<compile_context>
chip_gen: v5e
topology: v5e:2x2
jax: 0.10.0
libtpu: 0.0.40
codegen_flags: <defaults>
</compile_context>

<pallas_src>
import jax
import jax.numpy as jnp
from jax import lax
from jax.experimental import pallas as pl
from jax.experimental.pallas import tpu as pltpu

_LANE = 128
_SUB = 8


def _outconv_kernel(x_ref, w_ref, b_ref, o_ref):
    # x_ref: VMEM (Nb, Cin, S, 128)
    # w_ref: SMEM (Cout, Cin) scalars
    # b_ref: SMEM (Cout,)     scalars
    # o_ref: VMEM (Nb, Cout, S, 128)
    nb, cin, s_blk, _ = x_ref.shape
    cout = o_ref.shape[1]

    # Hoist all SMEM scalar reads above the strip loop.
    ws = [[w_ref[co, ci] for ci in range(cin)] for co in range(cout)]
    bs = [b_ref[co] for co in range(cout)]

    # Strip size: keep (Cin + 1) f32 slabs of (strip, 128) within ~48 vregs so
    # the accumulator never round-trips through VMEM.
    strip = max(_SUB, min(64, (384 // (cin + 1)) // _SUB * _SUB))
    strip = min(strip, s_blk)
    n_full = s_blk // strip          # >= 1 since strip <= s_blk
    rem = s_blk - n_full * strip     # static tail (only when s_blk % strip)

    def do_strip(off, size):
        for n in range(nb):          # tiny static batch-block loop
            xs = [x_ref[n, ci, pl.ds(off, size), :].astype(jnp.float32)
                  for ci in range(cin)]
            for co in range(cout):
                acc = xs[0] * ws[co][0] + bs[co]     # bias folded into init
                for ci in range(1, cin):
                    acc = acc + xs[ci] * ws[co][ci]
                o_ref[n, co, pl.ds(off, size), :] = acc.astype(o_ref.dtype)

    def body(i, carry):
        do_strip(pl.multiple_of(i * strip, strip), strip)
        return carry

    lax.fori_loop(0, n_full, body, 0, unroll=n_full <= 2)
    if rem:
        do_strip(n_full * strip, rem)


def _pick_tiles(n, s_total, cin, cout, itemsize):
    """Pick (Nb, S): batch-block and sublane-block sizes for the grid."""
    # Small-problem path: whole (padded) problem easily fits -> one grid step.
    whole_bytes = 2 * n * (cin + cout) * s_total * _LANE * itemsize
    if whole_bytes <= 2 * 1024 * 1024:
        return n, s_total

    # Streaming path: ~4 MiB input block; total double-buffered (in + out)
    # footprint capped at ~14 MiB (safe on v5e/v6e 128 MiB and v7x 64 MiB VMEM).
    in_block_budget = 4 * 1024 * 1024
    total_budget = 14 * 1024 * 1024
    s = min(in_block_budget // (cin * _LANE * itemsize),
            total_budget // (2 * (cin + cout) * _LANE * itemsize),
            s_total)
    s = max(_SUB, (s // _SUB) * _SUB)

    # v7x megacore: ensure enough grid steps to feed both TensorCores.
    min_steps = 8
    while n * (-(-s_total // s)) < min_steps and s > _SUB:
        s = max(_SUB, ((s // 2) // _SUB) * _SUB)

    if s >= s_total:
        s = s_total                  # full-dim block (always layout-legal)
    return 1, s


def out_conv(x_nchw, weight, bias):
    """1x1 Conv2d forward.

    x_nchw: (N, Cin, H, W)
    weight: (Cout, Cin, 1, 1)   (PyTorch Conv2d layout)
    bias:   (Cout,)
    returns (N, Cout, H, W)
    """
    N, Cin, H, W = x_nchw.shape
    Cout = weight.shape[0]
    HW = H * W
    itemsize = jnp.dtype(x_nchw.dtype).itemsize

    # Minimal pad of the flattened spatial axis to a multiple of 128, then
    # expose it as (sublane, lane) = (S_total, 128).  No transposes.
    pad = (-HW) % _LANE
    HWp = HW + pad
    S_total = HWp // _LANE

    x = x_nchw.reshape(N, Cin, HW)
    if pad:
        x = jnp.pad(x, ((0, 0), (0, 0), (0, pad)))
    x = x.reshape(N, Cin, S_total, _LANE)
    w = weight.reshape(Cout, Cin).astype(jnp.float32)
    b = bias.reshape(Cout).astype(jnp.float32)

    Nb, S = _pick_tiles(N, S_total, Cin, Cout, itemsize)
    grid = (N // Nb, -(-S_total // S))   # cdiv: partial final block is masked

    out = pl.pallas_call(
        _outconv_kernel,
        out_shape=jax.ShapeDtypeStruct((N, Cout, S_total, _LANE), x_nchw.dtype),
        grid=grid,
        in_specs=[
            pl.BlockSpec((Nb, Cin, S, _LANE), lambda n, s: (n, 0, s, 0)),
            # Weight / bias: whole arrays resident in SMEM (scalar reads only).
            pl.BlockSpec(memory_space=pltpu.MemorySpace.SMEM),
            pl.BlockSpec(memory_space=pltpu.MemorySpace.SMEM),
        ],
        out_specs=pl.BlockSpec((Nb, Cout, S, _LANE), lambda n, s: (n, 0, s, 0)),
        compiler_params=pltpu.CompilerParams(
            dimension_semantics=("parallel", "parallel"),
            vmem_limit_bytes=32 * 1024 * 1024,
        ),
    )(x, w, b)

    out = out.reshape(N, Cout, HWp)
    if pad:
        out = out[:, :, :HW]
    return out.reshape(N, Cout, H, W)


if __name__ == "__main__":
    key = jax.random.PRNGKey(0)
    k_x, k_w, k_b = jax.random.split(key, 3)

    # Module config: OutConv(in_channels=4, out_channels=3)
    N, Cin, Cout, Hh, Ww = 2, 4, 3, 16, 16

    x = jax.random.normal(k_x, (N, Cin, Hh, Ww), dtype=jnp.float32)
    weight = jax.random.normal(k_w, (Cout, Cin, 1, 1), dtype=jnp.float32) * 0.1
    bias = jax.random.normal(k_b, (Cout,), dtype=jnp.float32) * 0.1

    y = jax.block_until_ready(out_conv(x, weight, bias))

    # Reference: plain-JAX 1x1 conv.
    ref = (jnp.einsum("nchw,oc->nohw", x, weight.reshape(Cout, Cin))
           + bias[None, :, None, None])
    assert y.shape == (N, Cout, Hh, Ww)
    assert jnp.allclose(y, ref, atol=1e-5, rtol=1e-5)

    print("KERNEL_OK")
</pallas_src>

<mosaic_0001>
module attributes {stable_mosaic.version = 11 : i64} {
  func.func @_outconv_kernel(%arg0: i32, %arg1: i32, %arg2: memref<2x4x2x128xf32, #tpu.memory_space<vmem>>, %arg3: memref<3x4xf32, #tpu.memory_space<smem>>, %arg4: memref<3xf32, #tpu.memory_space<smem>>, %arg5: memref<2x3x2x128xf32, #tpu.memory_space<vmem>>) attributes {dimension_semantics = [#tpu.dimension_semantics<parallel>, #tpu.dimension_semantics<parallel>], iteration_bounds = array<i64: 1, 1>, scalar_prefetch = 0 : i64, scratch_operands = 0 : i64, tpu.core_type = #tpu.core_type<tc>, window_params = [{transform_indices = @transform_0, window_bounds = array<i64: 2, 4, 2, 128>}, {transform_indices = @transform_1, window_bounds = array<i64: 3, 4>}, {transform_indices = @transform_2, window_bounds = array<i64: 3>}, {transform_indices = @transform_3, window_bounds = array<i64: 2, 3, 2, 128>}]} {
    %c0 = arith.constant 0 : index
    %c0_0 = arith.constant 0 : index
    %0 = memref.load %arg3[%c0, %c0_0] : memref<3x4xf32, #tpu.memory_space<smem>>
    %c0_1 = arith.constant 0 : index
    %c1 = arith.constant 1 : index
    %1 = memref.load %arg3[%c0_1, %c1] : memref<3x4xf32, #tpu.memory_space<smem>>
    %c0_2 = arith.constant 0 : index
    %c2 = arith.constant 2 : index
    %2 = memref.load %arg3[%c0_2, %c2] : memref<3x4xf32, #tpu.memory_space<smem>>
    %c0_3 = arith.constant 0 : index
    %c3 = arith.constant 3 : index
    %3 = memref.load %arg3[%c0_3, %c3] : memref<3x4xf32, #tpu.memory_space<smem>>
    %c1_4 = arith.constant 1 : index
    %c0_5 = arith.constant 0 : index
    %4 = memref.load %arg3[%c1_4, %c0_5] : memref<3x4xf32, #tpu.memory_space<smem>>
    %c1_6 = arith.constant 1 : index
    %c1_7 = arith.constant 1 : index
    %5 = memref.load %arg3[%c1_6, %c1_7] : memref<3x4xf32, #tpu.memory_space<smem>>
    %c1_8 = arith.constant 1 : index
    %c2_9 = arith.constant 2 : index
    %6 = memref.load %arg3[%c1_8, %c2_9] : memref<3x4xf32, #tpu.memory_space<smem>>
    %c1_10 = arith.constant 1 : index
    %c3_11 = arith.constant 3 : index
    %7 = memref.load %arg3[%c1_10, %c3_11] : memref<3x4xf32, #tpu.memory_space<smem>>
    %c2_12 = arith.constant 2 : index
    %c0_13 = arith.constant 0 : index
    %8 = memref.load %arg3[%c2_12, %c0_13] : memref<3x4xf32, #tpu.memory_space<smem>>
    %c2_14 = arith.constant 2 : index
    %c1_15 = arith.constant 1 : index
    %9 = memref.load %arg3[%c2_14, %c1_15] : memref<3x4xf32, #tpu.memory_space<smem>>
    %c2_16 = arith.constant 2 : index
    %c2_17 = arith.constant 2 : index
    %10 = memref.load %arg3[%c2_16, %c2_17] : memref<3x4xf32, #tpu.memory_space<smem>>
    %c2_18 = arith.constant 2 : index
    %c3_19 = arith.constant 3 : index
    %11 = memref.load %arg3[%c2_18, %c3_19] : memref<3x4xf32, #tpu.memory_space<smem>>
    %c0_20 = arith.constant 0 : index
    %12 = memref.load %arg4[%c0_20] : memref<3xf32, #tpu.memory_space<smem>>
    %c1_21 = arith.constant 1 : index
    %13 = memref.load %arg4[%c1_21] : memref<3xf32, #tpu.memory_space<smem>>
    %c2_22 = arith.constant 2 : index
    %14 = memref.load %arg4[%c2_22] : memref<3xf32, #tpu.memory_space<smem>>
    %c0_i32 = arith.constant 0 : i32
    %c2_i32 = arith.constant 2 : i32
    %15 = arith.muli %c0_i32, %c2_i32 : i32
    %16 = tpu.assume_multiple %15, 2 : i32
    %c0_23 = arith.constant 0 : index
    %c0_24 = arith.constant 0 : index
    %17 = arith.index_cast %16 : i32 to index
    %c0_25 = arith.constant 0 : index
    %18 = vector.load %arg2[%c0_23, %c0_24, %17, %c0_25] : memref<2x4x2x128xf32, #tpu.memory_space<vmem>>, vector<1x1x2x128xf32>
    %19 = vector.shape_cast %18 : vector<1x1x2x128xf32> to vector<2x128xf32>
    %c0_26 = arith.constant 0 : index
    %c1_27 = arith.constant 1 : index
    %20 = arith.index_cast %16 : i32 to index
    %c0_28 = arith.constant 0 : index
    %21 = vector.load %arg2[%c0_26, %c1_27, %20, %c0_28] : memref<2x4x2x128xf32, #tpu.memory_space<vmem>>, vector<1x1x2x128xf32>
    %22 = vector.shape_cast %21 : vector<1x1x2x128xf32> to vector<2x128xf32>
    %c0_29 = arith.constant 0 : index
    %c2_30 = arith.constant 2 : index
    %23 = arith.index_cast %16 : i32 to index
    %c0_31 = arith.constant 0 : index
    %24 = vector.load %arg2[%c0_29, %c2_30, %23, %c0_31] : memref<2x4x2x128xf32, #tpu.memory_space<vmem>>, vector<1x1x2x128xf32>
    %25 = vector.shape_cast %24 : vector<1x1x2x128xf32> to vector<2x128xf32>
    %c0_32 = arith.constant 0 : index
    %c3_33 = arith.constant 3 : index
    %26 = arith.index_cast %16 : i32 to index
    %c0_34 = arith.constant 0 : index
    %27 = vector.load %arg2[%c0_32, %c3_33, %26, %c0_34] : memref<2x4x2x128xf32, #tpu.memory_space<vmem>>, vector<1x1x2x128xf32>
    %28 = vector.shape_cast %27 : vector<1x1x2x128xf32> to vector<2x128xf32>
    %29 = vector.broadcast %0 : f32 to vector<2x128xf32>
    %30 = arith.mulf %19, %29 : vector<2x128xf32>
    %31 = vector.broadcast %12 : f32 to vector<2x128xf32>
    %32 = arith.addf %30, %31 : vector<2x128xf32>
    %33 = vector.broadcast %1 : f32 to vector<2x128xf32>
    %34 = arith.mulf %22, %33 : vector<2x128xf32>
    %35 = arith.addf %32, %34 : vector<2x128xf32>
    %36 = vector.broadcast %2 : f32 to vector<2x128xf32>
    %37 = arith.mulf %25, %36 : vector<2x128xf32>
    %38 = arith.addf %35, %37 : vector<2x128xf32>
    %39 = vector.broadcast %3 : f32 to vector<2x128xf32>
    %40 = arith.mulf %28, %39 : vector<2x128xf32>
    %41 = arith.addf %38, %40 : vector<2x128xf32>
    %c0_35 = arith.constant 0 : index
    %c0_36 = arith.constant 0 : index
    %42 = arith.index_cast %16 : i32 to index
    %c0_37 = arith.constant 0 : index
    %43 = vector.load %arg5[%c0_35, %c0_36, %42, %c0_37] : memref<2x3x2x128xf32, #tpu.memory_space<vmem>>, vector<1x1x2x128xf32>
    %44 = vector.shape_cast %43 : vector<1x1x2x128xf32> to vector<2x128xf32>
    %45 = vector.shape_cast %41 : vector<2x128xf32> to vector<1x1x2x128xf32>
    tpu.vector_store %arg5[%c0_35, %c0_36, %42, %c0_37], %45 {strides = array<i32>} : memref<2x3x2x128xf32, #tpu.memory_space<vmem>>, vector<1x1x2x128xf32>,
    %46 = vector.broadcast %4 : f32 to vector<2x128xf32>
    %47 = arith.mulf %19, %46 : vector<2x128xf32>
    %48 = vector.broadcast %13 : f32 to vector<2x128xf32>
    %49 = arith.addf %47, %48 : vector<2x128xf32>
    %50 = vector.broadcast %5 : f32 to vector<2x128xf32>
    %51 = arith.mulf %22, %50 : vector<2x128xf32>
    %52 = arith.addf %49, %51 : vector<2x128xf32>
    %53 = vector.broadcast %6 : f32 to vector<2x128xf32>
    %54 = arith.mulf %25, %53 : vector<2x128xf32>
    %55 = arith.addf %52, %54 : vector<2x128xf32>
    %56 = vector.broadcast %7 : f32 to vector<2x128xf32>
    %57 = arith.mulf %28, %56 : vector<2x128xf32>
    %58 = arith.addf %55, %57 : vector<2x128xf32>
    %c0_38 = arith.constant 0 : index
    %c1_39 = arith.constant 1 : index
    %59 = arith.index_cast %16 : i32 to index
    %c0_40 = arith.constant 0 : index
    %60 = vector.load %arg5[%c0_38, %c1_39, %59, %c0_40] : memref<2x3x2x128xf32, #tpu.memory_space<vmem>>, vector<1x1x2x128xf32>
    %61 = vector.shape_cast %60 : vector<1x1x2x128xf32> to vector<2x128xf32>
    %62 = vector.shape_cast %58 : vector<2x128xf32> to vector<1x1x2x128xf32>
    tpu.vector_store %arg5[%c0_38, %c1_39, %59, %c0_40], %62 {strides = array<i32>} : memref<2x3x2x128xf32, #tpu.memory_space<vmem>>, vector<1x1x2x128xf32>,
    %63 = vector.broadcast %8 : f32 to vector<2x128xf32>
    %64 = arith.mulf %19, %63 : vector<2x128xf32>
    %65 = vector.broadcast %14 : f32 to vector<2x128xf32>
    %66 = arith.addf %64, %65 : vector<2x128xf32>
    %67 = vector.broadcast %9 : f32 to vector<2x128xf32>
    %68 = arith.mulf %22, %67 : vector<2x128xf32>
    %69 = arith.addf %66, %68 : vector<2x128xf32>
    %70 = vector.broadcast %10 : f32 to vector<2x128xf32>
    %71 = arith.mulf %25, %70 : vector<2x128xf32>
    %72 = arith.addf %69, %71 : vector<2x128xf32>
    %73 = vector.broadcast %11 : f32 to vector<2x128xf32>
    %74 = arith.mulf %28, %73 : vector<2x128xf32>
    %75 = arith.addf %72, %74 : vector<2x128xf32>
    %c0_41 = arith.constant 0 : index
    %c2_42 = arith.constant 2 : index
    %76 = arith.index_cast %16 : i32 to index
    %c0_43 = arith.constant 0 : index
    %77 = vector.load %arg5[%c0_41, %c2_42, %76, %c0_43] : memref<2x3x2x128xf32, #tpu.memory_space<vmem>>, vector<1x1x2x128xf32>
    %78 = vector.shape_cast %77 : vector<1x1x2x128xf32> to vector<2x128xf32>
    %79 = vector.shape_cast %75 : vector<2x128xf32> to vector<1x1x2x128xf32>
    tpu.vector_store %arg5[%c0_41, %c2_42, %76, %c0_43], %79 {strides = array<i32>} : memref<2x3x2x128xf32, #tpu.memory_space<vmem>>, vector<1x1x2x128xf32>,
    %c1_44 = arith.constant 1 : index
    %c0_45 = arith.constant 0 : index
    %80 = arith.index_cast %16 : i32 to index
    %c0_46 = arith.constant 0 : index
    %81 = vector.load %arg2[%c1_44, %c0_45, %80, %c0_46] : memref<2x4x2x128xf32, #tpu.memory_space<vmem>>, vector<1x1x2x128xf32>
    %82 = vector.shape_cast %81 : vector<1x1x2x128xf32> to vector<2x128xf32>
    %c1_47 = arith.constant 1 : index
    %c1_48 = arith.constant 1 : index
    %83 = arith.index_cast %16 : i32 to index
    %c0_49 = arith.constant 0 : index
    %84 = vector.load %arg2[%c1_47, %c1_48, %83, %c0_49] : memref<2x4x2x128xf32, #tpu.memory_space<vmem>>, vector<1x1x2x128xf32>
    %85 = vector.shape_cast %84 : vector<1x1x2x128xf32> to vector<2x128xf32>
    %c1_50 = arith.constant 1 : index
    %c2_51 = arith.constant 2 : index
    %86 = arith.index_cast %16 : i32 to index
    %c0_52 = arith.constant 0 : index
    %87 = vector.load %arg2[%c1_50, %c2_51, %86, %c0_52] : memref<2x4x2x128xf32, #tpu.memory_space<vmem>>, vector<1x1x2x128xf32>
    %88 = vector.shape_cast %87 : vector<1x1x2x128xf32> to vector<2x128xf32>
    %c1_53 = arith.constant 1 : index
    %c3_54 = arith.constant 3 : index
    %89 = arith.index_cast %16 : i32 to index
    %c0_55 = arith.constant 0 : index
    %90 = vector.load %arg2[%c1_53, %c3_54, %89, %c0_55] : memref<2x4x2x128xf32, #tpu.memory_space<vmem>>, vector<1x1x2x128xf32>
    %91 = vector.shape_cast %90 : vector<1x1x2x128xf32> to vector<2x128xf32>
    %92 = vector.broadcast %0 : f32 to vector<2x128xf32>
    %93 = arith.mulf %82, %92 : vector<2x128xf32>
    %94 = vector.broadcast %12 : f32 to vector<2x128xf32>
    %95 = arith.addf %93, %94 : vector<2x128xf32>
    %96 = vector.broadcast %1 : f32 to vector<2x128xf32>
    %97 = arith.mulf %85, %96 : vector<2x128xf32>
    %98 = arith.addf %95, %97 : vector<2x128xf32>
    %99 = vector.broadcast %2 : f32 to vector<2x128xf32>
    %100 = arith.mulf %88, %99 : vector<2x128xf32>
    %101 = arith.addf %98, %100 : vector<2x128xf32>
    %102 = vector.broadcast %3 : f32 to vector<2x128xf32>
    %103 = arith.mulf %91, %102 : vector<2x128xf32>
    %104 = arith.addf %101, %103 : vector<2x128xf32>
    %c1_56 = arith.constant 1 : index
    %c0_57 = arith.constant 0 : index
    %105 = arith.index_cast %16 : i32 to index
    %c0_58 = arith.constant 0 : index
    %106 = vector.load %arg5[%c1_56, %c0_57, %105, %c0_58] : memref<2x3x2x128xf32, #tpu.memory_space<vmem>>, vector<1x1x2x128xf32>
    %107 = vector.shape_cast %106 : vector<1x1x2x128xf32> to vector<2x128xf32>
    %108 = vector.shape_cast %104 : vector<2x128xf32> to vector<1x1x2x128xf32>
    tpu.vector_store %arg5[%c1_56, %c0_57, %105, %c0_58], %108 {strides = array<i32>} : memref<2x3x2x128xf32, #tpu.memory_space<vmem>>, vector<1x1x2x128xf32>,
    %109 = vector.broadcast %4 : f32 to vector<2x128xf32>
    %110 = arith.mulf %82, %109 : vector<2x128xf32>
    %111 = vector.broadcast %13 : f32 to vector<2x128xf32>
    %112 = arith.addf %110, %111 : vector<2x128xf32>
    %113 = vector.broadcast %5 : f32 to vector<2x128xf32>
    %114 = arith.mulf %85, %113 : vector<2x128xf32>
    %115 = arith.addf %112, %114 : vector<2x128xf32>
    %116 = vector.broadcast %6 : f32 to vector<2x128xf32>
    %117 = arith.mulf %88, %116 : vector<2x128xf32>
    %118 = arith.addf %115, %117 : vector<2x128xf32>
    %119 = vector.broadcast %7 : f32 to vector<2x128xf32>
    %120 = arith.mulf %91, %119 : vector<2x128xf32>
    %121 = arith.addf %118, %120 : vector<2x128xf32>
    %c1_59 = arith.constant 1 : index
    %c1_60 = arith.constant 1 : index
    %122 = arith.index_cast %16 : i32 to index
    %c0_61 = arith.constant 0 : index
    %123 = vector.load %arg5[%c1_59, %c1_60, %122, %c0_61] : memref<2x3x2x128xf32, #tpu.memory_space<vmem>>, vector<1x1x2x128xf32>
    %124 = vector.shape_cast %123 : vector<1x1x2x128xf32> to vector<2x128xf32>
    %125 = vector.shape_cast %121 : vector<2x128xf32> to vector<1x1x2x128xf32>
    tpu.vector_store %arg5[%c1_59, %c1_60, %122, %c0_61], %125 {strides = array<i32>} : memref<2x3x2x128xf32, #tpu.memory_space<vmem>>, vector<1x1x2x128xf32>,
    %126 = vector.broadcast %8 : f32 to vector<2x128xf32>
    %127 = arith.mulf %82, %126 : vector<2x128xf32>
    %128 = vector.broadcast %14 : f32 to vector<2x128xf32>
    %129 = arith.addf %127, %128 : vector<2x128xf32>
    %130 = vector.broadcast %9 : f32 to vector<2x128xf32>
    %131 = arith.mulf %85, %130 : vector<2x128xf32>
    %132 = arith.addf %129, %131 : vector<2x128xf32>
    %133 = vector.broadcast %10 : f32 to vector<2x128xf32>
    %134 = arith.mulf %88, %133 : vector<2x128xf32>
    %135 = arith.addf %132, %134 : vector<2x128xf32>
    %136 = vector.broadcast %11 : f32 to vector<2x128xf32>
    %137 = arith.mulf %91, %136 : vector<2x128xf32>
    %138 = arith.addf %135, %137 : vector<2x128xf32>
    %c1_62 = arith.constant 1 : index
    %c2_63 = arith.constant 2 : index
    %139 = arith.index_cast %16 : i32 to index
    %c0_64 = arith.constant 0 : index
    %140 = vector.load %arg5[%c1_62, %c2_63, %139, %c0_64] : memref<2x3x2x128xf32, #tpu.memory_space<vmem>>, vector<1x1x2x128xf32>
    %141 = vector.shape_cast %140 : vector<1x1x2x128xf32> to vector<2x128xf32>
    %142 = vector.shape_cast %138 : vector<2x128xf32> to vector<1x1x2x128xf32>
    tpu.vector_store %arg5[%c1_62, %c2_63, %139, %c0_64], %142 {strides = array<i32>} : memref<2x3x2x128xf32, #tpu.memory_space<vmem>>, vector<1x1x2x128xf32>,
    %c1_i32 = arith.constant 1 : i32
    return
  }
  func.func @transform_0(%arg0: i32, %arg1: i32) -> (i32, i32, i32, i32) {
    %c0_i32 = arith.constant 0 : i32
    %c0_i32_0 = arith.constant 0 : i32
    %c0_i32_1 = arith.constant 0 : i32
    return %arg0, %c0_i32, %arg1, %c0_i32_0 : i32, i32, i32, i32
  }
  func.func @transform_1(%arg0: i32, %arg1: i32) -> (i32, i32) {
    %c0_i32 = arith.constant 0 : i32
    %c0_i32_0 = arith.constant 0 : i32
    %c0_i32_1 = arith.constant 0 : i32
    return %c0_i32, %c0_i32_0 : i32, i32
  }
  func.func @transform_2(%arg0: i32, %arg1: i32) -> i32 {
    %c0_i32 = arith.constant 0 : i32
    %c0_i32_0 = arith.constant 0 : i32
    return %c0_i32 : i32
  }
  func.func @transform_3(%arg0: i32, %arg1: i32) -> (i32, i32, i32, i32) {
    %c0_i32 = arith.constant 0 : i32
    %c0_i32_0 = arith.constant 0 : i32
    %c0_i32_1 = arith.constant 0 : i32
    return %arg0, %c0_i32, %arg1, %c0_i32_0 : i32, i32, i32, i32
  }
}

</mosaic_0001>

<llo_original>
// kernel: tpu_custom_call.1
$region0: #{tpu_custom_call.1}
  #allocation0 [shape = 'u32[]', space=smem, size = 0x4, offset = 0x4, fixed_abs, tag = 'smem constant byte address 0x4 - core index']
  #allocation1 [shape = 'u32[72,128]{1,0:T(1,128)}', space=vmem, size = 0x9000, scoped, tag = 'internal scratch']
  %s0 = inlined_call_operand.hbm [shape: f32[2,4,2,128], index: 0, kind: input, shape index: {}]
  %s1 = inlined_call_operand.hbm [shape: f32[3,4], index: 1, kind: input, shape index: {}]
  %s2 = inlined_call_operand.vmem [shape: f32[3], index: 2, kind: input, shape index: {}]
  %s3 = inlined_call_operand.hbm [shape: f32[2,3,2,128], index: 3, kind: output, shape index: {}]
  %s4 = sld [smem:[#allocation0]]
  $region34: #{tpu_custom_call.1} parent=0
    _
  %s6 = ssub.s32 1, %s4
  %s7 = scalar_select 0, %s6, %s4
  $region1: #{tpu_custom_call.1} parent=0
    #allocation2 [shape = 'u8[8192]{0}', space=vmem, size = 0x2000, scoped, tag = 'input window, operand 0, single buffered']
    #allocation3 [shape = 's32[1]{0}', space=sflag, size = 0x4, scoped, tag = 'scoped memory for tpu_custom_call.1']
    #allocation4 [shape = 's32[1]{0}', space=sflag, size = 0x4, scoped, tag = 'scoped memory for tpu_custom_call.1']
    #allocation5 [shape = 's32[1]{0}', space=sflag, size = 0x4, scoped, tag = 'scoped memory for tpu_custom_call.1']
    #allocation6 [shape = 's32[1]{0}', space=sflag, size = 0x4, scoped, tag = 'scoped memory for tpu_custom_call.1']
    #allocation7 [shape = 'u8[2048]{0}', space=smem, size = 0x800, scoped, tag = 'input window, operand 1, single buffered']
    #allocation8 [shape = 'u8[512]{0}', space=smem, size = 0x200, scoped, tag = 'input window, operand 2, single buffered']
    #allocation9 [shape = 'u8[6144]{0}', space=vmem, size = 0x1800, scoped, tag = 'output window, operand 0, single buffered']
    %8 = vsyncpa [#allocation3], 0
    %9 = vsyncpa [#allocation5], 0
    %10 = vsyncpa [#allocation6], 0
    %11 = vsyncpa [#allocation4], 0
    // Predicated region
    $region2: #{tpu_custom_call.1} parent=1 // pred_check
      _
    $region3: #{tpu_custom_call.1} parent=1 // pred_check_branch
      %13 = sbr.rel (0) target = $region5
    $region4: #{tpu_custom_call.1} parent=1 // pred_region
      %15 = vsyncadd [#allocation3], 0
      %s16 = sshll.u32 %s0, 4
      %s17 = int_to_ptr.hbm [resolvable:$true] %s16
      %s18 = sshll.u32 [#allocation2], 4
      %s19 = int_to_ptr.vmem [resolvable:$true] %s18
      %24 = dma.hbm_to_vmem [thread:$0]  %s17, 256, %s19, [#allocation3], 32, 32, 2
    $region5: #{tpu_custom_call.1} parent=1 // pred_fallthru
      _
    // Predicated region
    $region6: #{tpu_custom_call.1} parent=1 // pred_check
      _
    $region7: #{tpu_custom_call.1} parent=1 // pred_check_branch
      %26 = sbr.rel (0) target = $region9
    $region8: #{tpu_custom_call.1} parent=1 // pred_region
      %28 = vsyncadd [#allocation5], 0
      %s30 = sshll.u32 %s1, 4
      %s31 = int_to_ptr.hbm [resolvable:$true] %s30
      %33 = dma.hbm_to_smem %s31, 64, [#allocation7], [#allocation5]
    $region9: #{tpu_custom_call.1} parent=1 // pred_fallthru
      _
    // Predicated region
    $region10: #{tpu_custom_call.1} parent=1 // pred_check
      _
    $region11: #{tpu_custom_call.1} parent=1 // pred_check_branch
      %35 = sbr.rel (0) target = $region13
    $region12: #{tpu_custom_call.1} parent=1 // pred_region
      %37 = vsyncadd [#allocation6], 0
      %s39 = sshll.u32 %s2, 4
      %s40 = int_to_ptr.vmem [resolvable:$true] %s39
      %42 = dma.vmem_to_smem %s40, 16, [#allocation8], [#allocation6]
    $region13: #{tpu_custom_call.1} parent=1 // pred_fallthru
      _
    // Predicated region
    $region14: #{tpu_custom_call.1} parent=1 // pred_check
      _
    $region15: #{tpu_custom_call.1} parent=1 // pred_check_branch
      %44 = sbr.rel (0) target = $region17
    $region16: #{tpu_custom_call.1} parent=1 // pred_region
      %46 = dma.done [#allocation3], 256
    $region17: #{tpu_custom_call.1} parent=1 // pred_fallthru
      _
    // Predicated region
    $region18: #{tpu_custom_call.1} parent=1 // pred_check
      _
    $region19: #{tpu_custom_call.1} parent=1 // pred_check_branch
      %48 = sbr.rel (0) target = $region21
    $region20: #{tpu_custom_call.1} parent=1 // pred_region
      %50 = dma.done [#allocation5], 64
    $region21: #{tpu_custom_call.1} parent=1 // pred_fallthru
      _
    // Predicated region
    $region22: #{tpu_custom_call.1} parent=1 // pred_check
      _
    $region23: #{tpu_custom_call.1} parent=1 // pred_check_branch
      %52 = sbr.rel (0) target = $region25
    $region24: #{tpu_custom_call.1} parent=1 // pred_region
      %54 = dma.done [#allocation6], 16
    $region25: #{tpu_custom_call.1} parent=1 // pred_fallthru
      _
    %55 = sfence
    %s56 = sld [smem:[#allocation7]]
    %s57 = sld [smem:[#allocation7 + $0x1]]
    %s58 = sld [smem:[#allocation7 + $0x2]]
    %s59 = sld [smem:[#allocation7 + $0x3]]
    %s60 = sld [smem:[#allocation7 + $0x80]]
    %s61 = sld [smem:[#allocation7 + $0x81]]
    %s62 = sld [smem:[#allocation7 + $0x82]]
    %s63 = sld [smem:[#allocation7 + $0x83]]
    %s64 = sld [smem:[#allocation7 + $0x100]]
    %s65 = sld [smem:[#allocation7 + $0x101]]
    %s66 = sld [smem:[#allocation7 + $0x102]]
    %s67 = sld [smem:[#allocation7 + $0x103]]
    %s68 = sld [smem:[#allocation8]]
    %s69 = sld [smem:[#allocation8 + $0x1]]
    %s70 = sld [smem:[#allocation8 + $0x2]]
    %v71 = vld [vmem:[#allocation2] sm:$0x3]
    %s72 = sadd.s32 0, 2
    %s73 = scalar_lea.vmem [#allocation2], %s72
    %v74 = vld [vmem:[%s73] sm:$0x3]
    %s75 = sadd.s32 0, 4
    %s76 = scalar_lea.vmem [#allocation2], %s75
    %v77 = vld [vmem:[%s76] sm:$0x3]
    %s78 = sadd.s32 0, 6
    %s79 = scalar_lea.vmem [#allocation2], %s78
    %v80 = vld [vmem:[%s79] sm:$0x3]
    %v81 = vstv %s56
    %v82 = vmul.f32 %v71, %v81
    %v83 = vstv %s68
    %v84 = vadd.f32 %v82, %v83
    %v85 = vstv %s57
    %v86 = vmul.f32 %v74, %v85
    %v87 = vadd.f32 %v84, %v86
    %v88 = vstv %s58
    %v89 = vmul.f32 %v77, %v88
    %v90 = vadd.f32 %v87, %v89
    %v91 = vstv %s59
    %v92 = vmul.f32 %v80, %v91
    %v93 = vadd.f32 %v90, %v92
    %94 = vst [vmem:[#allocation9] sm:$0x3] %v93
    %v95 = vstv %s60
    %v96 = vmul.f32 %v71, %v95
    %v97 = vstv %s69
    %v98 = vadd.f32 %v96, %v97
    %v99 = vstv %s61
    %v100 = vmul.f32 %v74, %v99
    %v101 = vadd.f32 %v98, %v100
    %v102 = vstv %s62
    %v103 = vmul.f32 %v77, %v102
    %v104 = vadd.f32 %v101, %v103
    %v105 = vstv %s63
    %v106 = vmul.f32 %v80, %v105
    %v107 = vadd.f32 %v104, %v106
    %s108 = scalar_lea.vmem [#allocation9], %s72
    %109 = vst [vmem:[%s108] sm:$0x3] %v107
    %v110 = vstv %s64
    %v111 = vmul.f32 %v71, %v110
    %v112 = vstv %s70
    %v113 = vadd.f32 %v111, %v112
    %v114 = vstv %s65
    %v115 = vmul.f32 %v74, %v114
    %v116 = vadd.f32 %v113, %v115
    %v117 = vstv %s66
    %v118 = vmul.f32 %v77, %v117
    %v119 = vadd.f32 %v116, %v118
    %v120 = vstv %s67
    %v121 = vmul.f32 %v80, %v120
    %v122 = vadd.f32 %v119, %v121
    %s123 = scalar_lea.vmem [#allocation9], %s75
    %124 = vst [vmem:[%s123] sm:$0x3] %v122
    %s125 = sadd.s32 0, 8
    %s126 = scalar_lea.vmem [#allocation2], %s125
    %v127 = vld [vmem:[%s126] sm:$0x3]
    %s128 = sadd.s32 %s72, 8
    %s129 = scalar_lea.vmem [#allocation2], %s128
    %v130 = vld [vmem:[%s129] sm:$0x3]
    %s131 = sadd.s32 %s75, 8
    %s132 = scalar_lea.vmem [#allocation2], %s131
    %v133 = vld [vmem:[%s132] sm:$0x3]
    %s134 = sadd.s32 %s78, 8
    %s135 = scalar_lea.vmem [#allocation2], %s134
    %v136 = vld [vmem:[%s135] sm:$0x3]
    %v137 = vmul.f32 %v127, %v81
    %v138 = vadd.f32 %v137, %v83
    %v139 = vmul.f32 %v130, %v85
    %v140 = vadd.f32 %v138, %v139
    %v141 = vmul.f32 %v133, %v88
    %v142 = vadd.f32 %v140, %v141
    %v143 = vmul.f32 %v136, %v91
    %v144 = vadd.f32 %v142, %v143
    %s145 = scalar_lea.vmem [#allocation9], %s78
    %146 = vst [vmem:[%s145] sm:$0x3] %v144
    %v147 = vmul.f32 %v127, %v95
    %v148 = vadd.f32 %v147, %v97
    %v149 = vmul.f32 %v130, %v99
    %v150 = vadd.f32 %v148, %v149
    %v151 = vmul.f32 %v133, %v102
    %v152 = vadd.f32 %v150, %v151
    %v153 = vmul.f32 %v136, %v105
    %v154 = vadd.f32 %v152, %v153
    %s155 = sadd.s32 %s72, 6
    %s156 = scalar_lea.vmem [#allocation9], %s155
    %157 = vst [vmem:[%s156] sm:$0x3] %v154
    %v158 = vmul.f32 %v127, %v110
    %v159 = vadd.f32 %v158, %v112
    %v160 = vmul.f32 %v130, %v114
    %v161 = vadd.f32 %v159, %v160
    %v162 = vmul.f32 %v133, %v117
    %v163 = vadd.f32 %v161, %v162
    %v164 = vmul.f32 %v136, %v120
    %v165 = vadd.f32 %v163, %v164
    %s166 = sadd.s32 %s75, 6
    %s167 = scalar_lea.vmem [#allocation9], %s166
    %168 = vst [vmem:[%s167] sm:$0x3] %v165
    // Predicated region
    $region26: #{tpu_custom_call.1} parent=1 // pred_check
      _
    $region27: #{tpu_custom_call.1} parent=1 // pred_check_branch
      %170 = sbr.rel (0) target = $region29
    $region28: #{tpu_custom_call.1} parent=1 // pred_region
      %172 = vsyncadd [#allocation4], 0
      %s173 = sshll.u32 [#allocation9], 4
      %s174 = int_to_ptr.vmem [resolvable:$true] %s173
      %s175 = sshll.u32 %s3, 4
      %s176 = int_to_ptr.hbm [resolvable:$true] %s175
      %181 = dma.vmem_to_hbm [thread:$0]  %s174, 192, %s176, [#allocation4], 32, 32, 2
    $region29: #{tpu_custom_call.1} parent=1 // pred_fallthru
      _
    // Predicated region
    $region30: #{tpu_custom_call.1} parent=1 // pred_check
      _
    $region31: #{tpu_custom_call.1} parent=1 // pred_check_branch
      %183 = sbr.rel (0) target = $region33
    $region32: #{tpu_custom_call.1} parent=1 // pred_region
      %185 = dma.done [#allocation4], 192
    $region33: #{tpu_custom_call.1} parent=1 // pred_fallthru
      _
    %186 = vsyncpa [#allocation3], 1
    %187 = vsyncpa [#allocation4], 1
    %188 = vsyncpa [#allocation5], 1
    %189 = vsyncpa [#allocation6], 1

</llo_original>
